<compile_context>
chip_gen: v6e
topology: v6e:2x2x1
jax: 0.10.0
libtpu: 0.0.40
codegen_flags: <defaults>
</compile_context>

<pallas_src>
import functools

import jax
import jax.numpy as jnp
from jax import lax
from jax.experimental import pallas as pl
from jax.experimental.pallas import tpu as pltpu

_INV_SQRT2 = 0.7071067811865476       # 1/sqrt(2)
_SQRT_2_OVER_PI = 0.7978845608028654  # sqrt(2/pi)


def _round_up(n: int, m: int) -> int:
    return ((n + m - 1) // m) * m


def _gelu(h, approx: bool):
    if approx:
        # tanh approximation (EUP path; frees the VALU slot once compute-bound).
        return 0.5 * h * (1.0 + jnp.tanh(_SQRT_2_OVER_PI * (h + 0.044715 * (h * h * h))))
    # Exact erf GELU (torch nn.GELU default).
    return 0.5 * h * (1.0 + lax.erf(h * _INV_SQRT2))


# ---------------------------------------------------------------------------
# Kernel variant 1: weights fully resident in VMEM (128 MiB parts).
# grid = (num_row_tiles,)
# ---------------------------------------------------------------------------
def _mlp_kernel_resident(x_ref, w1_ref, b1_ref, w2_ref, b2_ref, o_ref, *, approx_gelu):
    # x_ref: (tm, D)   w1_ref: (D, H)   b1_ref: (1, H) f32
    # w2_ref: (H, D)   b2_ref: (1, D) f32   o_ref: (tm, D)
    h = jnp.dot(x_ref[...], w1_ref[...], preferred_element_type=jnp.float32)
    h = h + b1_ref[...]
    g = _gelu(h, approx_gelu)
    out = jnp.dot(g.astype(w2_ref.dtype), w2_ref[...],
                  preferred_element_type=jnp.float32)
    o_ref[...] = (out + b2_ref[...]).astype(o_ref.dtype)


# ---------------------------------------------------------------------------
# Kernel variant 2: hidden dim streamed, f32 accumulator (64 MiB parts / v7x).
# grid = (num_row_tiles, H // th)
# ---------------------------------------------------------------------------
def _mlp_kernel_streamed(x_ref, w1_ref, b1_ref, w2_ref, b2_ref, o_ref, acc_ref,
                         *, approx_gelu):
    # x_ref: (tm, D)   w1_ref: (D, th)  b1_ref: (1, th) f32
    # w2_ref: (th, D)  b2_ref: (1, D) f32   o_ref: (tm, D)
    # acc_ref: (tm, D) f32 scratch, lives across the H steps.
    j = pl.program_id(1)

    @pl.when(j == 0)
    def _init():
        acc_ref[...] = jnp.zeros_like(acc_ref)

    h = jnp.dot(x_ref[...], w1_ref[...], preferred_element_type=jnp.float32)
    h = h + b1_ref[...]
    g = _gelu(h, approx_gelu)
    acc_ref[...] += jnp.dot(g.astype(w2_ref.dtype), w2_ref[...],
                            preferred_element_type=jnp.float32)

    @pl.when(j == pl.num_programs(1) - 1)
    def _finalize():
        o_ref[...] = (acc_ref[...] + b2_ref[...]).astype(o_ref.dtype)


# ---------------------------------------------------------------------------
# VMEM budgeting (generation-aware).
# ---------------------------------------------------------------------------
def _vmem_capacity_bytes() -> int:
    try:
        return int(pltpu.get_tpu_info().vmem_capacity_bytes)
    except Exception:
        return 64 << 20  # conservative (v7x per-TC)


def _resident_vmem_bytes(tm, D, H, in_bytes, out_bytes):
    return (2 * tm * D * in_bytes            # x row tile (double buffered)
            + 2 * tm * D * out_bytes         # out tile
            + 2 * (D * H + H * D) * in_bytes   # W1 + W2 (counted double buffered, conservative)
            + 2 * 8 * (H + D) * 4            # biases (sublane padded)
            + 3 * tm * H * 4)                # in-kernel h / g f32 + bf16 cast temporaries


def _streamed_vmem_bytes(tm, th, D, in_bytes, out_bytes):
    return (2 * tm * D * in_bytes
            + 2 * tm * D * out_bytes
            + 2 * (D * th + th * D) * in_bytes
            + 2 * 8 * (th + D) * 4
            + tm * D * 4                     # f32 accumulator scratch
            + 3 * tm * th * 4)               # in-kernel h / g intermediates


# ---------------------------------------------------------------------------
# Public wrapper.
# ---------------------------------------------------------------------------
@functools.partial(jax.jit,
                   static_argnames=("tm", "th", "use_bf16", "approx_gelu",
                                    "weights_resident"))
def mlp_pallas(x, w1, b1, w2, b2, *, tm=1024, th=512, use_bf16=True,
               approx_gelu=False, weights_resident=None):
    """x: (B, S, D). w1: (D, H), b1: (H,), w2: (H, D), b2: (D,). Returns (B, S, D)."""
    B, S, D = x.shape
    H = w1.shape[1]
    M = B * S
    out_dtype = x.dtype

    compute_dtype = jnp.bfloat16 if use_bf16 else x.dtype
    in_bytes = 2 if use_bf16 else jnp.dtype(x.dtype).itemsize
    out_bytes = jnp.dtype(out_dtype).itemsize

    vmem_cap = _vmem_capacity_bytes()
    budget = int(vmem_cap * 0.75)   # leave headroom for Mosaic internal scratch

    # ---- row tile selection (no padding of x) -----------------------------
    if M > tm:
        tm = _round_up(tm, 8)                  # multiple of 8 sublanes; cdiv grid
    else:
        tm = M                                 # full-extent block (any M allowed)
        if M >= 512:
            # give megacore (v7x) at least two row tiles when there is enough work
            tm = _round_up((M + 1) // 2, 8)

    # ---- hidden tile selection (must divide H; lane aligned) ---------------
    th_candidates = [c for c in (th, 1024, 512, 256, 128) if c <= H and H % c == 0]
    th = th_candidates[0] if th_candidates else H

    # ---- pick kernel variant ------------------------------------------------
    resident_bytes = _resident_vmem_bytes(tm, D, H, in_bytes, out_bytes)
    if weights_resident is None:
        use_resident = resident_bytes <= budget
    else:
        use_resident = bool(weights_resident)

    if not use_resident:
        # shrink tiles until the streamed working set fits the budget
        while (_streamed_vmem_bytes(tm, th, D, in_bytes, out_bytes) > budget
               and th > 128 and H % (th // 2) == 0):
            th //= 2
        while (_streamed_vmem_bytes(tm, th, D, in_bytes, out_bytes) > budget
               and tm > 256):
            tm = _round_up(max(256, tm // 2), 8)

    grid_rows = pl.cdiv(M, tm)

    # ---- operands -----------------------------------------------------------
    x2 = x.reshape(M, D).astype(compute_dtype)
    w1c = w1.astype(compute_dtype)
    w2c = w2.astype(compute_dtype)
    b1_2 = b1.reshape(1, H).astype(jnp.float32)
    b2_2 = b2.reshape(1, D).astype(jnp.float32)

    # ---- compiler params / cost estimate ------------------------------------
    if use_resident:
        vmem_est = resident_bytes
        weight_streams = 1                       # weights fetched once (constant block)
    else:
        vmem_est = _streamed_vmem_bytes(tm, th, D, in_bytes, out_bytes)
        weight_streams = int(grid_rows)          # re-streamed per row tile

    vmem_limit = int(min(vmem_est + (16 << 20), vmem_cap - (8 << 20)))
    vmem_limit = max(vmem_limit, 32 << 20)

    cost = pl.CostEstimate(
        flops=4 * M * D * H,                     # two matmuls
        transcendentals=M * H,                   # one erf/tanh per hidden element
        bytes_accessed=int(
            M * D * in_bytes                     # x
            + M * D * out_bytes                  # out
            + 2 * D * H * in_bytes * weight_streams   # W1 + W2 (re)streams
            + (H + D) * 4                        # biases
        ),
    )

    # ---- pallas_call ---------------------------------------------------------
    if use_resident:
        kernel = functools.partial(_mlp_kernel_resident, approx_gelu=approx_gelu)
        grid_spec = pltpu.PrefetchScalarGridSpec(
            num_scalar_prefetch=0,
            grid=(grid_rows,),
            in_specs=[
                pl.BlockSpec((tm, D), lambda i: (i, 0)),   # activation row tile
                pl.BlockSpec((D, H), lambda i: (0, 0)),    # W1 (resident)
                pl.BlockSpec((1, H), lambda i: (0, 0)),    # b1 (resident)
                pl.BlockSpec((H, D), lambda i: (0, 0)),    # W2 (resident)
                pl.BlockSpec((1, D), lambda i: (0, 0)),    # b2 (resident)
            ],
            out_specs=pl.BlockSpec((tm, D), lambda i: (i, 0)),
        )
        dim_sem = ("parallel",)
    else:
        kernel = functools.partial(_mlp_kernel_streamed, approx_gelu=approx_gelu)
        grid_spec = pltpu.PrefetchScalarGridSpec(
            num_scalar_prefetch=0,
            grid=(grid_rows, H // th),
            in_specs=[
                pl.BlockSpec((tm, D), lambda i, j: (i, 0)),   # activation row tile
                pl.BlockSpec((D, th), lambda i, j: (0, j)),   # W1 column slice
                pl.BlockSpec((1, th), lambda i, j: (0, j)),   # b1 slice
                pl.BlockSpec((th, D), lambda i, j: (j, 0)),   # W2 row slice
                pl.BlockSpec((1, D), lambda i, j: (0, 0)),    # b2 (resident)
            ],
            out_specs=pl.BlockSpec((tm, D), lambda i, j: (i, 0)),
            scratch_shapes=[pltpu.VMEM((tm, D), jnp.float32)],
        )
        dim_sem = ("parallel", "arbitrary")

    out = pl.pallas_call(
        kernel,
        out_shape=jax.ShapeDtypeStruct((M, D), out_dtype),
        grid_spec=grid_spec,
        compiler_params=pltpu.CompilerParams(
            dimension_semantics=dim_sem,
            vmem_limit_bytes=vmem_limit,
        ),
        cost_estimate=cost,
    )(x2, w1c, b1_2, w2c, b2_2)

    return out.reshape(B, S, D)


# ---------------------------------------------------------------------------
# Reference / demo.
# ---------------------------------------------------------------------------
def _torch_linear_init(key, fan_in, fan_out):
    """Deterministic init matching nn.Linear's U(-1/sqrt(fan_in), 1/sqrt(fan_in))."""
    kw, kb = jax.random.split(key)
    bound = 1.0 / jnp.sqrt(float(fan_in))
    # Stored as (in, out) so the kernel multiplies without transposing.
    w = jax.random.uniform(kw, (fan_in, fan_out), jnp.float32, -bound, bound)
    b = jax.random.uniform(kb, (fan_out,), jnp.float32, -bound, bound)
    return w, b


if __name__ == "__main__":
    # Small shapes consistent with the module (dim_model, dim_mlp scaled down).
    B, S = 2, 8            # batch, sequence length
    D, H = 128, 256        # dim_model, dim_mlp

    key = jax.random.PRNGKey(0)
    kx, k1, k2 = jax.random.split(key, 3)

    x = jax.random.normal(kx, (B, S, D), jnp.float32)
    w1, b1 = _torch_linear_init(k1, D, H)
    w2, b2 = _torch_linear_init(k2, H, D)

    def ref_f32(xa):
        h = xa.reshape(-1, D) @ w1 + b1
        g = 0.5 * h * (1.0 + lax.erf(h * _INV_SQRT2))
        return (g @ w2 + b2).reshape(xa.shape)

    ref = ref_f32(x)

    # 1) f32 path, auto variant selection (resident weights on 128 MiB parts).
    out_f32 = jax.block_until_ready(mlp_pallas(x, w1, b1, w2, b2, use_bf16=False))
    assert out_f32.shape == (B, S, D)
    assert jnp.allclose(out_f32, ref, atol=2e-3, rtol=2e-3), "f32 path mismatch"

    # 2) bf16-operand / f32-accumulate fast path (default).
    out_bf16 = jax.block_until_ready(mlp_pallas(x, w1, b1, w2, b2))
    assert float(jnp.max(jnp.abs(out_bf16 - ref))) < 5e-2, "bf16 path drifted"

    # 3) forced H-streaming variant (what a 64 MiB-VMEM part would pick),
    #    small hidden tile so the f32 accumulator runs over 2 H-steps.
    out_stream = jax.block_until_ready(
        mlp_pallas(x, w1, b1, w2, b2, use_bf16=False, th=128, weights_resident=False))
    assert jnp.allclose(out_stream, ref, atol=2e-3, rtol=2e-3), "streamed path mismatch"

    # 4) ragged row count (M = 10, not a multiple of the row tile / sublane):
    #    exercises the no-pad full-extent-block path.
    x_odd = jax.random.normal(kx, (2, 5, D), jnp.float32)
    out_odd = jax.block_until_ready(mlp_pallas(x_odd, w1, b1, w2, b2, use_bf16=False))
    assert jnp.allclose(out_odd, ref_f32(x_odd), atol=2e-3, rtol=2e-3), "ragged M mismatch"

    # 5) tanh-approx GELU (EUP path; intentionally deviates slightly from
    #    torch's exact-erf default, gated behind approx_gelu).
    out_tanh = jax.block_until_ready(
        mlp_pallas(x, w1, b1, w2, b2, use_bf16=False, approx_gelu=True))
    assert float(jnp.max(jnp.abs(out_tanh - ref))) < 1e-1, "approx GELU drifted"

    print("KERNEL_OK")
</pallas_src>

<mosaic_0001>
module attributes {stable_mosaic.version = 11 : i64} {
  func.func @_mlp_kernel_resident(%arg0: i32, %arg1: memref<16x128xf32, #tpu.memory_space<vmem>>, %arg2: memref<128x256xf32, #tpu.memory_space<vmem>>, %arg3: memref<1x256xf32, #tpu.memory_space<vmem>>, %arg4: memref<256x128xf32, #tpu.memory_space<vmem>>, %arg5: memref<1x128xf32, #tpu.memory_space<vmem>>, %arg6: memref<16x128xf32, #tpu.memory_space<vmem>>) attributes {dimension_semantics = [#tpu.dimension_semantics<parallel>], iteration_bounds = array<i64: 1>, scalar_prefetch = 0 : i64, scratch_operands = 0 : i64, tpu.core_type = #tpu.core_type<tc>, window_params = [{transform_indices = @transform_0, window_bounds = array<i64: 16, 128>}, {pipeline_mode = #tpu.pipeline_mode<synchronous>, transform_indices = @transform_1, window_bounds = array<i64: 128, 256>}, {pipeline_mode = #tpu.pipeline_mode<synchronous>, transform_indices = @transform_2, window_bounds = array<i64: 1, 256>}, {pipeline_mode = #tpu.pipeline_mode<synchronous>, transform_indices = @transform_3, window_bounds = array<i64: 256, 128>}, {pipeline_mode = #tpu.pipeline_mode<synchronous>, transform_indices = @transform_4, window_bounds = array<i64: 1, 128>}, {transform_indices = @transform_5, window_bounds = array<i64: 16, 128>}]} {
    %c0 = arith.constant 0 : index
    %c0_0 = arith.constant 0 : index
    %0 = vector.load %arg1[%c0, %c0_0] : memref<16x128xf32, #tpu.memory_space<vmem>>, vector<16x128xf32>
    %c0_1 = arith.constant 0 : index
    %c0_2 = arith.constant 0 : index
    %1 = vector.load %arg2[%c0_1, %c0_2] : memref<128x256xf32, #tpu.memory_space<vmem>>, vector<128x256xf32>
    %cst = arith.constant dense<0.000000e+00> : vector<16x256xf32>
    %2 = tpu.matmul %0, %1, %cst {dimension_numbers = #tpu.dot_dimension_numbers<[1], [0], [0], [1], [0, 0, 1, 1], [], []>} : vector<16x128xf32>, vector<128x256xf32>, vector<16x256xf32> -> vector<16x256xf32>
    %c0_3 = arith.constant 0 : index
    %c0_4 = arith.constant 0 : index
    %3 = vector.load %arg3[%c0_3, %c0_4] : memref<1x256xf32, #tpu.memory_space<vmem>>, vector<1x256xf32>
    %4 = vector.broadcast %3 : vector<1x256xf32> to vector<16x256xf32>
    %5 = arith.addf %2, %4 : vector<16x256xf32>
    %cst_5 = arith.constant 5.000000e-01 : f32
    %6 = vector.broadcast %cst_5 : f32 to vector<16x256xf32>
    %7 = arith.mulf %6, %5 : vector<16x256xf32>
    %cst_6 = arith.constant 0.707106769 : f32
    %8 = vector.broadcast %cst_6 : f32 to vector<16x256xf32>
    %9 = arith.mulf %5, %8 : vector<16x256xf32>
    %10 = math.erf %9 : vector<16x256xf32>
    %cst_7 = arith.constant 1.000000e+00 : f32
    %11 = vector.broadcast %cst_7 : f32 to vector<16x256xf32>
    %12 = arith.addf %11, %10 : vector<16x256xf32>
    %13 = arith.mulf %7, %12 : vector<16x256xf32>
    %c0_8 = arith.constant 0 : index
    %c0_9 = arith.constant 0 : index
    %14 = vector.load %arg4[%c0_8, %c0_9] : memref<256x128xf32, #tpu.memory_space<vmem>>, vector<256x128xf32>
    %cst_10 = arith.constant dense<0.000000e+00> : vector<16x128xf32>
    %15 = tpu.matmul %13, %14, %cst_10 {dimension_numbers = #tpu.dot_dimension_numbers<[1], [0], [0], [1], [0, 0, 1, 1], [], []>} : vector<16x256xf32>, vector<256x128xf32>, vector<16x128xf32> -> vector<16x128xf32>
    %c0_11 = arith.constant 0 : index
    %c0_12 = arith.constant 0 : index
    %16 = vector.load %arg5[%c0_11, %c0_12] : memref<1x128xf32, #tpu.memory_space<vmem>>, vector<1x128xf32>
    %17 = vector.broadcast %16 : vector<1x128xf32> to vector<16x128xf32>
    %18 = arith.addf %15, %17 : vector<16x128xf32>
    %c0_13 = arith.constant 0 : index
    %c0_14 = arith.constant 0 : index
    %19 = vector.load %arg6[%c0_13, %c0_14] : memref<16x128xf32, #tpu.memory_space<vmem>>, vector<16x128xf32>
    tpu.vector_store %arg6[%c0_13, %c0_14], %18 {strides = array<i32>} : memref<16x128xf32, #tpu.memory_space<vmem>>, vector<16x128xf32>,
    return
  }
  func.func @transform_0(%arg0: i32) -> (i32, i32) {
    %c0_i32 = arith.constant 0 : i32
    %c0_i32_0 = arith.constant 0 : i32
    return %arg0, %c0_i32 : i32, i32
  }
  func.func @transform_1(%arg0: i32) -> (i32, i32) {
    %c0_i32 = arith.constant 0 : i32
    %c0_i32_0 = arith.constant 0 : i32
    %c0_i32_1 = arith.constant 0 : i32
    return %c0_i32, %c0_i32_0 : i32, i32
  }
  func.func @transform_2(%arg0: i32) -> (i32, i32) {
    %c0_i32 = arith.constant 0 : i32
    %c0_i32_0 = arith.constant 0 : i32
    %c0_i32_1 = arith.constant 0 : i32
    return %c0_i32, %c0_i32_0 : i32, i32
  }
  func.func @transform_3(%arg0: i32) -> (i32, i32) {
    %c0_i32 = arith.constant 0 : i32
    %c0_i32_0 = arith.constant 0 : i32
    %c0_i32_1 = arith.constant 0 : i32
    return %c0_i32, %c0_i32_0 : i32, i32
  }
  func.func @transform_4(%arg0: i32) -> (i32, i32) {
    %c0_i32 = arith.constant 0 : i32
    %c0_i32_0 = arith.constant 0 : i32
    %c0_i32_1 = arith.constant 0 : i32
    return %c0_i32, %c0_i32_0 : i32, i32
  }
  func.func @transform_5(%arg0: i32) -> (i32, i32) {
    %c0_i32 = arith.constant 0 : i32
    %c0_i32_0 = arith.constant 0 : i32
    return %arg0, %c0_i32 : i32, i32
  }
}

</mosaic_0001>

<llo_original>
// kernel: mlp_pallas.1
$region0: #{mlp_pallas.1}
  #allocation0 [shape = 'u32[]', space=smem, size = 0x4, offset = 0x4, fixed_abs, tag = 'smem constant byte address 0x4 - core index']
  #allocation1 [shape = 'u32[144,128]{1,0:T(1,128)}', space=vmem, size = 0x12000, scoped, tag = 'internal scratch']
  %s0 = inlined_call_operand.hbm [shape: f32[16,128], index: 0, kind: input, shape index: {}]
  %s1 = inlined_call_operand.hbm [shape: f32[128,256], index: 1, kind: input, shape index: {}]
  %s2 = inlined_call_operand.vmem [shape: f32[1,256], index: 2, kind: input, shape index: {}]
  %s3 = inlined_call_operand.hbm [shape: f32[256,128], index: 3, kind: input, shape index: {}]
  %s4 = inlined_call_operand.vmem [shape: f32[1,128], index: 4, kind: input, shape index: {}]
  %s5 = inlined_call_operand.hbm [shape: f32[16,128], index: 5, kind: output, shape index: {}]
  %s6 = sld [smem:[#allocation0]]
  $region42: #{mlp_pallas.1} parent=0
    _
  %s8 = ssub.s32 1, %s6
  %s9 = scalar_select 0, %s8, %s6
  $region1: #{mlp_pallas.1} parent=0
    #allocation2 [shape = 'u8[8192]{0}', space=vmem, size = 0x2000, scoped, tag = 'input window, operand 0, single buffered']
    #allocation3 [shape = 's32[1]{0}', space=sflag, size = 0x4, scoped, tag = 'scoped memory for mlp_pallas.1']
    #allocation4 [shape = 's32[1]{0}', space=sflag, size = 0x4, scoped, tag = 'scoped memory for mlp_pallas.1']
    #allocation5 [shape = 'u8[131072]{0}', space=vmem, size = 0x20000, scoped, tag = 'input window, operand 1, single buffered']
    #allocation6 [shape = 's32[1]{0}', space=sflag, size = 0x4, scoped, tag = 'scoped memory for mlp_pallas.1']
    #allocation7 [shape = 'u8[131072]{0}', space=vmem, size = 0x20000, scoped, tag = 'input window, operand 3, single buffered']
    #allocation8 [shape = 'u8[8192]{0}', space=vmem, size = 0x2000, scoped, tag = 'output window, operand 0, single buffered']
    %10 = vsyncpa [#allocation3], 0
    %11 = vsyncpa [#allocation6], 0
    %12 = vsyncpa [#allocation4], 0
    // Predicated region
    $region2: #{mlp_pallas.1} parent=1 // pred_check
      _
    $region3: #{mlp_pallas.1} parent=1 // pred_check_branch
      %14 = sbr.rel (0) target = $region5
    $region4: #{mlp_pallas.1} parent=1 // pred_region
      %s16 = ssub.s32 256, 256
      %17 = vsyncadd [#allocation3], %s16
      %s18 = sshll.u32 [#allocation2], 4
      %s19 = int_to_ptr.vmem [resolvable:$true] %s18
      %24 = dma.hbm_to_vmem [thread:$0]  %s0, 256, %s19, [#allocation3], 128, 128, 8
    $region5: #{mlp_pallas.1} parent=1 // pred_fallthru
      _
    // Predicated region
    $region6: #{mlp_pallas.1} parent=1 // pred_check
      _
    $region7: #{mlp_pallas.1} parent=1 // pred_check_branch
      %26 = sbr.rel (0) target = $region9
    $region8: #{mlp_pallas.1} parent=1 // pred_region
      %s28 = ssub.s32 4096, 4096
      %29 = vsyncadd [#allocation6], %s28
      %s30 = sshll.u32 [#allocation5], 4
      %s31 = int_to_ptr.vmem [resolvable:$true] %s30
      %36 = dma.hbm_to_vmem [thread:$0]  %s1, 4096, %s31, [#allocation6], 256, 256, 16
    $region9: #{mlp_pallas.1} parent=1 // pred_fallthru
      _
    // Predicated region
    $region10: #{mlp_pallas.1} parent=1 // pred_check
      _
    $region11: #{mlp_pallas.1} parent=1 // pred_check_branch
      %38 = sbr.rel (0) target = $region13
    $region12: #{mlp_pallas.1} parent=1 // pred_region
      _
    $region13: #{mlp_pallas.1} parent=1 // pred_fallthru
      _
    // Predicated region
    $region14: #{mlp_pallas.1} parent=1 // pred_check
      _
    $region15: #{mlp_pallas.1} parent=1 // pred_check_branch
      %40 = sbr.rel (0) target = $region17
    $region16: #{mlp_pallas.1} parent=1 // pred_region
      %s42 = ssub.s32 4096, 4096
      %43 = vsyncadd [#allocation6], %s42
      %s44 = sshll.u32 [#allocation7], 4
      %s45 = int_to_ptr.vmem [resolvable:$true] %s44
      %50 = dma.hbm_to_vmem [thread:$0]  %s3, 4096, %s45, [#allocation6], 128, 128, 8
    $region17: #{mlp_pallas.1} parent=1 // pred_fallthru
      _
    // Predicated region
    $region18: #{mlp_pallas.1} parent=1 // pred_check
      _
    $region19: #{mlp_pallas.1} parent=1 // pred_check_branch
      %52 = sbr.rel (0) target = $region21
    $region20: #{mlp_pallas.1} parent=1 // pred_region
      _
    $region21: #{mlp_pallas.1} parent=1 // pred_fallthru
      _
    // Predicated region
    $region22: #{mlp_pallas.1} parent=1 // pred_check
      _
    $region23: #{mlp_pallas.1} parent=1 // pred_check_branch
      %54 = sbr.rel (0) target = $region25
    $region24: #{mlp_pallas.1} parent=1 // pred_region
      %55 = dma.done [#allocation3], 256
    $region25: #{mlp_pallas.1} parent=1 // pred_fallthru
      _
    // Predicated region
    $region26: #{mlp_pallas.1} parent=1 // pred_check
      _
    $region27: #{mlp_pallas.1} parent=1 // pred_check_branch
      %57 = sbr.rel (0) target = $region29
    $region28: #{mlp_pallas.1} parent=1 // pred_region
      %58 = dma.done [#allocation6], 4096
    $region29: #{mlp_pallas.1} parent=1 // pred_fallthru
      _
    // Predicated region
    $region30: #{mlp_pallas.1} parent=1 // pred_check
      _
    $region31: #{mlp_pallas.1} parent=1 // pred_check_branch
      %60 = sbr.rel (0) target = $region33
    $region32: #{mlp_pallas.1} parent=1 // pred_region
      %61 = dma.done [#allocation6], 4096
    $region33: #{mlp_pallas.1} parent=1 // pred_fallthru
      _
    %v62 = vld [vmem:[#allocation2] sm:$0xff]
    %v63 = vld [vmem:[#allocation2 + $0x8] sm:$0xff]
    %v64 = vld [vmem:[#allocation5] sm:$0xff]
    %v65 = vld [vmem:[#allocation5 + $0x8] sm:$0xff]
    %v66 = vld [vmem:[#allocation5 + $0x10] sm:$0xff]
    %v67 = vld [vmem:[#allocation5 + $0x18] sm:$0xff]
    %v68 = vld [vmem:[#allocation5 + $0x20] sm:$0xff]
    %v69 = vld [vmem:[#allocation5 + $0x28] sm:$0xff]
    %v70 = vld [vmem:[#allocation5 + $0x30] sm:$0xff]
    %v71 = vld [vmem:[#allocation5 + $0x38] sm:$0xff]
    %v72 = vld [vmem:[#allocation5 + $0x40] sm:$0xff]
    %v73 = vld [vmem:[#allocation5 + $0x48] sm:$0xff]
    %v74 = vld [vmem:[#allocation5 + $0x50] sm:$0xff]
    %v75 = vld [vmem:[#allocation5 + $0x58] sm:$0xff]
    %v76 = vld [vmem:[#allocation5 + $0x60] sm:$0xff]
    %v77 = vld [vmem:[#allocation5 + $0x68] sm:$0xff]
    %v78 = vld [vmem:[#allocation5 + $0x70] sm:$0xff]
    %v79 = vld [vmem:[#allocation5 + $0x78] sm:$0xff]
    %v80 = vld [vmem:[#allocation5 + $0x80] sm:$0xff]
    %v81 = vld [vmem:[#allocation5 + $0x88] sm:$0xff]
    %v82 = vld [vmem:[#allocation5 + $0x90] sm:$0xff]
    %v83 = vld [vmem:[#allocation5 + $0x98] sm:$0xff]
    %v84 = vld [vmem:[#allocation5 + $0xa0] sm:$0xff]
    %v85 = vld [vmem:[#allocation5 + $0xa8] sm:$0xff]
    %v86 = vld [vmem:[#allocation5 + $0xb0] sm:$0xff]
    %v87 = vld [vmem:[#allocation5 + $0xb8] sm:$0xff]
    %v88 = vld [vmem:[#allocation5 + $0xc0] sm:$0xff]
    %v89 = vld [vmem:[#allocation5 + $0xc8] sm:$0xff]
    %v90 = vld [vmem:[#allocation5 + $0xd0] sm:$0xff]
    %v91 = vld [vmem:[#allocation5 + $0xd8] sm:$0xff]
    %v92 = vld [vmem:[#allocation5 + $0xe0] sm:$0xff]
    %v93 = vld [vmem:[#allocation5 + $0xe8] sm:$0xff]
    %v94 = vld [vmem:[#allocation5 + $0xf0] sm:$0xff]
    %v95 = vld [vmem:[#allocation5 + $0xf8] sm:$0xff]
    %v96 = vld [vmem:[%s2] sm:$0x3]
    %v98 = vlaneseq
    %v99 = vshrl.u32 %v98, 7
    %v100 = vsub.s32 0, %v99
    %v101 = vrot.slane %v96, %v100
    %v102 = vlaneseq
    %v103 = vshrl.u32 %v102, 7
    %v104 = vsub.s32 1, %v103
    %v105 = vrot.slane %v96, %v104
    %108 = vmatprep.subr.mxu0 %v95
    %109 = vmatpush1.msra.mxu0 %v94
    %110 = vmatprep.subr.mxu0 %v93
    %111 = vmatpush1.msra.mxu0 %v92
    %112 = vmatprep.subr.mxu0 %v91
    %113 = vmatpush1.msra.mxu0 %v90
    %114 = vmatprep.subr.mxu0 %v89
    %115 = vmatpush1.msra.mxu0 %v88
    %116 = vmatprep.subr.mxu0 %v87
    %117 = vmatpush1.msra.mxu0 %v86
    %118 = vmatprep.subr.mxu0 %v85
    %119 = vmatpush1.msra.mxu0 %v84
    %120 = vmatprep.subr.mxu0 %v83
    %121 = vmatpush1.msra.mxu0 %v82
    %122 = vmatprep.subr.mxu0 %v81
    %123 = vmatpush1.msra.mxu0 %v80
    %124 = vmatprep.subr.mxu0 %v79
    %125 = vmatpush1.msra.mxu0 %v78
    %126 = vmatprep.subr.mxu0 %v77
    %127 = vmatpush1.msra.mxu0 %v76
    %128 = vmatprep.subr.mxu0 %v75
    %129 = vmatpush1.msra.mxu0 %v74
    %130 = vmatprep.subr.mxu0 %v73
    %131 = vmatpush1.msra.mxu0 %v72
    %132 = vmatprep.subr.mxu0 %v71
    %133 = vmatpush1.msra.mxu0 %v70
    %134 = vmatprep.subr.mxu0 %v69
    %135 = vmatpush1.msra.mxu0 %v68
    %136 = vmatprep.subr.mxu0 %v67
    %137 = vmatpush1.msra.mxu0 %v66
    %138 = vmatprep.subr.mxu0 %v65
    %139 = vmatpush1.msra.mxu0 %v64
    %140 = vmatprep.subr.mxu0 0.0
    %141 = vmatpush2.msra.mxu0 0.0
    %142 = vmatprep.subr.mxu0 0.0
    %143 = vmatpush2.msra.mxu0 0.0
    %144 = vmatprep.subr.mxu0 0.0
    %145 = vmatpush2.msra.mxu0 0.0
    %146 = vmatprep.subr.mxu0 0.0
    %147 = vmatpush2.msra.mxu0 0.0
    %148 = vmatprep.subr.mxu0 0.0
    %149 = vmatpush2.msra.mxu0 0.0
    %150 = vmatprep.subr.mxu0 0.0
    %151 = vmatpush2.msra.mxu0 0.0
    %152 = vmatprep.subr.mxu0 0.0
    %153 = vmatpush2.msra.mxu0 0.0
    %154 = vmatprep.subr.mxu0 0.0
    %155 = vmatpush2.msra.mxu0 0.0
    %156 = vmatprep.subr.mxu0 0.0
    %157 = vmatpush2.msra.mxu0 0.0
    %158 = vmatprep.subr.mxu0 0.0
    %159 = vmatpush2.msra.mxu0 0.0
    %160 = vmatprep.subr.mxu0 0.0
    %161 = vmatpush2.msra.mxu0 0.0
    %162 = vmatprep.subr.mxu0 0.0
    %163 = vmatpush2.msra.mxu0 0.0
    %164 = vmatprep.subr.mxu0 0.0
    %165 = vmatpush2.msra.mxu0 0.0
    %166 = vmatprep.subr.mxu0 0.0
    %167 = vmatpush2.msra.mxu0 0.0
    %168 = vmatprep.subr.mxu0 0.0
    %169 = vmatpush2.msra.mxu0 0.0
    %170 = vmatprep.subr.mxu0 0.0
    %171 = vmatpush2.msra.mxu0 0.0
    %172 = vmatprep.mubr.f32.mxu0 0.0
    %173 = vmatmul.mubr.f32.gmra.mxu0 %v62
    %v174 = vpop.f32.mrf.mxu0
    %v175 = vadd.f32 %v101, %v174
    %v176 = vpop.f32.mrf.mxu0
    %v177 = vadd.f32 %v105, %v176
    %178 = vmatprep.mubr.f32.mxu0 0.0
    %179 = vmatmul.mubr.f32.gmra.mxu0 %v63
    %v180 = vpop.f32.mrf.mxu0
    %v181 = vadd.f32 %v101, %v180
    %v182 = vpop.f32.mrf.mxu0
    %v183 = vadd.f32 %v105, %v182
    %184 = vdwg.mxu0
    %v185 = vmul.f32 %v175, 0.5
    %v186 = vmul.f32 %v177, 0.5
    %v187 = vmul.f32 %v181, 0.5
    %v188 = vmul.f32 %v183, 0.5
    %v189 = vmul.f32 %v175, 0.70710677
    %v190 = vmul.f32 %v177, 0.70710677
    %v191 = vmul.f32 %v181, 0.70710677
    %v192 = vmul.f32 %v183, 0.70710677
    %v193 = verf.f32.pop %v189
    %v194 = verf.f32.pop %v190
    %v195 = verf.f32.pop %v191
    %v196 = verf.f32.pop %v192
    %v197 = vadd.f32 %v193, 1.0
    %v198 = vadd.f32 %v194, 1.0
    %v199 = vadd.f32 %v195, 1.0
    %v200 = vadd.f32 %v196, 1.0
    %v201 = vmul.f32 %v185, %v197
    %v202 = vmul.f32 %v186, %v198
    %v203 = vmul.f32 %v187, %v199
    %v204 = vmul.f32 %v188, %v200
    %v205 = vld [vmem:[#allocation7] sm:$0xff]
    %v206 = vld [vmem:[#allocation7 + $0x8] sm:$0xff]
    %v207 = vld [vmem:[#allocation7 + $0x10] sm:$0xff]
    %v208 = vld [vmem:[#allocation7 + $0x18] sm:$0xff]
    %v209 = vld [vmem:[#allocation7 + $0x20] sm:$0xff]
    %v210 = vld [vmem:[#allocation7 + $0x28] sm:$0xff]
    %v211 = vld [vmem:[#allocation7 + $0x30] sm:$0xff]
    %v212 = vld [vmem:[#allocation7 + $0x38] sm:$0xff]
    %v213 = vld [vmem:[#allocation7 + $0x40] sm:$0xff]
    %v214 = vld [vmem:[#allocation7 + $0x48] sm:$0xff]
    %v215 = vld [vmem:[#allocation7 + $0x50] sm:$0xff]
    %v216 = vld [vmem:[#allocation7 + $0x58] sm:$0xff]
    %v217 = vld [vmem:[#allocation7 + $0x60] sm:$0xff]
    %v218 = vld [vmem:[#allocation7 + $0x68] sm:$0xff]
    %v219 = vld [vmem:[#allocation7 + $0x70] sm:$0xff]
    %v220 = vld [vmem:[#allocation7 + $0x78] sm:$0xff]
    %v221 = vld [vmem:[#allocation7 + $0x80] sm:$0xff]
    %v222 = vld [vmem:[#allocation7 + $0x88] sm:$0xff]
    %v223 = vld [vmem:[#allocation7 + $0x90] sm:$0xff]
    %v224 = vld [vmem:[#allocation7 + $0x98] sm:$0xff]
    %v225 = vld [vmem:[#allocation7 + $0xa0] sm:$0xff]
    %v226 = vld [vmem:[#allocation7 + $0xa8] sm:$0xff]
    %v227 = vld [vmem:[#allocation7 + $0xb0] sm:$0xff]
    %v228 = vld [vmem:[#allocation7 + $0xb8] sm:$0xff]
    %v229 = vld [vmem:[#allocation7 + $0xc0] sm:$0xff]
    %v230 = vld [vmem:[#allocation7 + $0xc8] sm:$0xff]
    %v231 = vld [vmem:[#allocation7 + $0xd0] sm:$0xff]
    %v232 = vld [vmem:[#allocation7 + $0xd8] sm:$0xff]
    %v233 = vld [vmem:[#allocation7 + $0xe0] sm:$0xff]
    %v234 = vld [vmem:[#allocation7 + $0xe8] sm:$0xff]
    %v235 = vld [vmem:[#allocation7 + $0xf0] sm:$0xff]
    %v236 = vld [vmem:[#allocation7 + $0xf8] sm:$0xff]
    %v237 = vld [vmem:[%s4] sm:$0x1]
    %v239 = vlaneseq
    %v240 = vshrl.u32 %v239, 7
    %v241 = vsub.s32 0, %v240
    %v242 = vrot.slane %v237, %v241
    %244 = vmatprep.subr.mxu0 0.0
    %245 = vmatpush1.msra.mxu0 %v220
    %246 = vmatprep.subr.mxu0 0.0
    %247 = vmatpush1.msra.mxu0 %v219
    %248 = vmatprep.subr.mxu0 0.0
    %249 = vmatpush1.msra.mxu0 %v218
    %250 = vmatprep.subr.mxu0 0.0
    %251 = vmatpush1.msra.mxu0 %v217
    %252 = vmatprep.subr.mxu0 0.0
    %253 = vmatpush1.msra.mxu0 %v216
    %254 = vmatprep.subr.mxu0 0.0
    %255 = vmatpush1.msra.mxu0 %v215
    %256 = vmatprep.subr.mxu0 0.0
    %257 = vmatpush1.msra.mxu0 %v214
    %258 = vmatprep.subr.mxu0 0.0
    %259 = vmatpush1.msra.mxu0 %v213
    %260 = vmatprep.subr.mxu0 0.0
    %261 = vmatpush1.msra.mxu0 %v212
    %262 = vmatprep.subr.mxu0 0.0
    %263 = vmatpush1.msra.mxu0 %v211
    %264 = vmatprep.subr.mxu0 0.0
    %265 = vmatpush1.msra.mxu0 %v210
    %266 = vmatprep.subr.mxu0 0.0
    %267 = vmatpush1.msra.mxu0 %v209
    %268 = vmatprep.subr.mxu0 0.0
    %269 = vmatpush1.msra.mxu0 %v208
    %270 = vmatprep.subr.mxu0 0.0
    %271 = vmatpush1.msra.mxu0 %v207
    %272 = vmatprep.subr.mxu0 0.0
    %273 = vmatpush1.msra.mxu0 %v206
    %274 = vmatprep.subr.mxu0 0.0
    %275 = vmatpush1.msra.mxu0 %v205
    %276 = vmatprep.subr.mxu0 0.0
    %277 = vmatpush2.msra.mxu0 %v236
    %278 = vmatprep.subr.mxu0 0.0
    %279 = vmatpush2.msra.mxu0 %v235
    %280 = vmatprep.subr.mxu0 0.0
    %281 = vmatpush2.msra.mxu0 %v234
    %282 = vmatprep.subr.mxu0 0.0
    %283 = vmatpush2.msra.mxu0 %v233
    %284 = vmatprep.subr.mxu0 0.0
    %285 = vmatpush2.msra.mxu0 %v232
    %286 = vmatprep.subr.mxu0 0.0
    %287 = vmatpush2.msra.mxu0 %v231
    %288 = vmatprep.subr.mxu0 0.0
    %289 = vmatpush2.msra.mxu0 %v230
    %290 = vmatprep.subr.mxu0 0.0
    %291 = vmatpush2.msra.mxu0 %v229
    %292 = vmatprep.subr.mxu0 0.0
    %293 = vmatpush2.msra.mxu0 %v228
    %294 = vmatprep.subr.mxu0 0.0
    %295 = vmatpush2.msra.mxu0 %v227
    %296 = vmatprep.subr.mxu0 0.0
    %297 = vmatpush2.msra.mxu0 %v226
    %298 = vmatprep.subr.mxu0 0.0
    %299 = vmatpush2.msra.mxu0 %v225
    %300 = vmatprep.subr.mxu0 0.0
    %301 = vmatpush2.msra.mxu0 %v224
    %302 = vmatprep.subr.mxu0 0.0
    %303 = vmatpush2.msra.mxu0 %v223
    %304 = vmatprep.subr.mxu0 0.0
    %305 = vmatpush2.msra.mxu0 %v222
    %306 = vmatprep.subr.mxu0 0.0
    %307 = vmatpush2.msra.mxu0 %v221
    %308 = vmatprep.mubr.f32.mxu0 %v202
    %309 = vmatmul.mubr.f32.gmra.mxu0 %v201
    %v310 = vpop.f32.mrf.mxu0
    %v311 = vadd.f32 %v242, %v310
    %v312 = vpop.f32.mrf.mxu0
    %313 = vmatprep.mubr.f32.mxu0 %v204
    %314 = vmatmul.mubr.f32.gmra.mxu0 %v203
    %v315 = vpop.f32.mrf.mxu0
    %v316 = vadd.f32 %v242, %v315
    %v317 = vpop.f32.mrf.mxu0
    %318 = vdwg.mxu0
    %319 = vst [vmem:[#allocation8] sm:$0xff] %v311
    %320 = vst [vmem:[#allocation8 + $0x8] sm:$0xff] %v316
    // Predicated region
    $region34: #{mlp_pallas.1} parent=1 // pred_check
      _
    $region35: #{mlp_pallas.1} parent=1 // pred_check_branch
      %322 = sbr.rel (0) target = $region37
    $region36: #{mlp_pallas.1} parent=1 // pred_region
      %s324 = ssub.s32 256, 256
      %325 = vsyncadd [#allocation4], %s324
      %s326 = sshll.u32 [#allocation8], 4
      %s327 = int_to_ptr.vmem [resolvable:$true] %s326
      %332 = dma.vmem_to_hbm [thread:$0]  %s327, 256, %s5, [#allocation4], 128, 128, 8
    $region37: #{mlp_pallas.1} parent=1 // pred_fallthru
      _
    // Predicated region
    $region38: #{mlp_pallas.1} parent=1 // pred_check
      _
    $region39: #{mlp_pallas.1} parent=1 // pred_check_branch
      %334 = sbr.rel (0) target = $region41
    $region40: #{mlp_pallas.1} parent=1 // pred_region
      %335 = dma.done [#allocation4], 256
    $region41: #{mlp_pallas.1} parent=1 // pred_fallthru
      _
    %336 = vsyncpa [#allocation3], 1
    %337 = vsyncpa [#allocation6], 1
    %338 = vsyncpa [#allocation4], 1

</llo_original>
